<compile_context>
chip_gen: v6e
topology: v6e:2x2x1
jax: 0.10.0
libtpu: 0.0.40
codegen_flags: <defaults>
</compile_context>

<pallas_src>
import functools
import math

import jax
import jax.numpy as jnp
from jax.experimental import pallas as pl
from jax.experimental.pallas import tpu as pltpu

_LANE = 128
_SUBLANE = 8


def _gaussian_dropout_kernel(seed_ref, x_ref, o_ref, *, std):
    bm, bn = x_ref.shape
    std_f = jnp.float32(std)

    # Per-block key: hash of (seed, block id) -> decorrelated streams per block.
    seed_u = seed_ref[0].astype(jnp.uint32)
    pid_u = pl.program_id(0).astype(jnp.uint32)
    key = (seed_u * jnp.uint32(0x9E3779B9)
           + pid_u * jnp.uint32(0x85EBCA6B)
           + jnp.uint32(0x6A09E667))

    def _mix(v):
        # murmur3-style finalizer with the block key injected mid-way.
        v = v * jnp.uint32(0xCC9E2D51)
        v = v ^ (v >> 15)
        v = v * jnp.uint32(0x1B873593)
        v = v ^ key
        v = v ^ (v >> 13)
        v = v * jnp.uint32(0xC2B2AE35)
        v = v ^ (v >> 16)
        return v

    def _normals(shape):
        # Two standard-normal fields of `shape` from one Box-Muller pass
        # (both the cos and sin outputs are used).
        row = jax.lax.broadcasted_iota(jnp.int32, shape, 0).astype(jnp.uint32)
        col = jax.lax.broadcasted_iota(jnp.int32, shape, 1).astype(jnp.uint32)
        ctr = (row * jnp.uint32(shape[1]) + col) * jnp.uint32(2)
        b1 = _mix(ctr)
        b2 = _mix(ctr + jnp.uint32(1))
        # 24-bit mantissas: u1 in (0, 1] (log-safe), u2 in [0, 1).
        u1 = ((b1 >> 8).astype(jnp.int32).astype(jnp.float32) + 1.0) * jnp.float32(2.0 ** -24)
        u2 = (b2 >> 8).astype(jnp.int32).astype(jnp.float32) * jnp.float32(2.0 ** -24)
        r = jnp.sqrt(jnp.float32(-2.0) * jnp.log(u1))
        theta = jnp.float32(2.0 * math.pi) * u2
        return r * jnp.cos(theta), r * jnp.sin(theta)

    if bn % 256 == 0:
        # Split along lanes: both halves stay 128-lane aligned.
        half = bn // 2
        z1, z2 = _normals((bm, half))
        x1 = x_ref[:, :half].astype(jnp.float32)
        x2 = x_ref[:, half:].astype(jnp.float32)
        o_ref[:, :half] = (x1 * (1.0 + std_f * z1)).astype(o_ref.dtype)
        o_ref[:, half:] = (x2 * (1.0 + std_f * z2)).astype(o_ref.dtype)
    elif bm % 2 == 0:
        # Split along rows.
        half = bm // 2
        z1, z2 = _normals((half, bn))
        x1 = x_ref[:half, :].astype(jnp.float32)
        x2 = x_ref[half:, :].astype(jnp.float32)
        o_ref[:half, :] = (x1 * (1.0 + std_f * z1)).astype(o_ref.dtype)
        o_ref[half:, :] = (x2 * (1.0 + std_f * z2)).astype(o_ref.dtype)
    else:
        # Odd-row fallback (tiny blocks only): use the cosine output.
        z1, _ = _normals((bm, bn))
        o_ref[...] = (x_ref[...].astype(jnp.float32)
                      * (1.0 + std_f * z1)).astype(o_ref.dtype)


def _choose_layout(n, sub):
    """Pick a lane-dense (rows, lanes, pad) factorization; avoid padding when a
    wide multiple of 128 divides the element count exactly."""
    best = None
    for lanes in (4096, 2048, 1024, 512, 256, 128):
        if n % lanes == 0:
            rows = n // lanes
            if rows >= sub:
                return rows, lanes, 0
            if best is None:
                best = (rows, lanes, 0)
    if best is not None:
        return best
    pad = (-n) % (sub * _LANE)
    return (n + pad) // _LANE, _LANE, pad


def gaussian_dropout(x, p, seed, training=True):
    """Forward pass of GaussianDropout.

    Matches the PyTorch module: identity in eval mode or when p == 0; otherwise
    multiplies elementwise by noise ~ N(1, std) with std = p / (1 - p).
    """
    assert 0.0 <= p < 1.0
    if (not training) or p <= 0.0:
        return x

    std = p / (1.0 - p)
    orig_shape = x.shape
    n = int(x.size)
    itemsize = jnp.dtype(x.dtype).itemsize
    # Sublane granularity: 8 rows for 4-byte dtypes, 16 for 2-byte, 32 for 1-byte.
    sub = _SUBLANE * max(1, 4 // itemsize)

    rows, lanes, pad = _choose_layout(n, sub)

    flat = x.reshape(-1)
    if pad:
        flat = jnp.pad(flat, (0, pad))
    x2 = flat.reshape(rows, lanes)

    # Block rows: target ~2 MiB per input block (far under VMEM on all chips),
    # rounded to the sublane granularity; Pallas masks the ragged last block.
    target_bytes = 2 * 1024 * 1024
    block_rows = max(1, target_bytes // (lanes * itemsize))
    if block_rows >= rows:
        block_rows = rows
    else:
        block_rows = max(sub, (block_rows // sub) * sub)
    grid = (pl.cdiv(rows, block_rows),)

    seed_arr = jnp.asarray([seed], dtype=jnp.int32)

    cost = pl.CostEstimate(
        flops=30 * n,            # integer hash + Box-Muller arithmetic
        transcendentals=2 * n,   # log + sqrt + sin + cos per pair of elements
        bytes_accessed=2 * n * itemsize,
    )

    out2 = pl.pallas_call(
        functools.partial(_gaussian_dropout_kernel, std=std),
        out_shape=jax.ShapeDtypeStruct(x2.shape, x2.dtype),
        grid_spec=pltpu.PrefetchScalarGridSpec(
            num_scalar_prefetch=1,
            grid=grid,
            in_specs=[pl.BlockSpec((block_rows, lanes), lambda i, seed_ref: (i, 0))],
            out_specs=pl.BlockSpec((block_rows, lanes), lambda i, seed_ref: (i, 0)),
        ),
        compiler_params=pltpu.CompilerParams(
            dimension_semantics=("parallel",),
            vmem_limit_bytes=32 * 1024 * 1024,
        ),
        cost_estimate=cost,
    )(seed_arr, x2)

    if pad:
        return out2.reshape(-1)[:n].reshape(orig_shape)
    return out2.reshape(orig_shape)


if __name__ == "__main__":
    key = jax.random.PRNGKey(0)
    x = jax.random.normal(key, (2, 4, 16, 16), dtype=jnp.float32)  # NCHW
    p = 0.3

    # Training mode: multiplicative Gaussian noise ~ N(1, p/(1-p)).
    y_train = jax.block_until_ready(gaussian_dropout(x, p=p, seed=1234, training=True))
    assert y_train.shape == x.shape and y_train.dtype == x.dtype

    # Eval mode (or p == 0): identity.
    y_eval = jax.block_until_ready(gaussian_dropout(x, p=p, seed=1234, training=False))
    assert bool(jnp.all(y_eval == x))

    # Sanity check: noise ratio has mean ~1 and std ~ p/(1-p).
    # Avoid near-zero denominators when recovering the per-element noise.
    mask = jnp.abs(x) > 1e-3
    ratio = jnp.where(mask, y_train / jnp.where(mask, x, 1.0), 0.0)
    cnt = jnp.sum(mask)
    mean = float(jnp.sum(ratio) / cnt)
    var = float(jnp.sum(jnp.where(mask, (ratio - mean) ** 2, 0.0)) / cnt)
    stdv = var ** 0.5
    expected_std = p / (1.0 - p)
    assert abs(mean - 1.0) < 0.1, mean
    assert abs(stdv - expected_std) < 0.1, (stdv, expected_std)

    print("KERNEL_OK")
</pallas_src>

<mosaic_0001>
module attributes {stable_mosaic.version = 11 : i64} {
  func.func @_gaussian_dropout_kernel(%arg0: i32, %arg1: memref<1xi32, #tpu.memory_space<smem>>, %arg2: memref<8x256xf32, #tpu.memory_space<vmem>>, %arg3: memref<8x256xf32, #tpu.memory_space<vmem>>) attributes {dimension_semantics = [#tpu.dimension_semantics<parallel>], iteration_bounds = array<i64: 1>, scalar_prefetch = 1 : i64, scratch_operands = 0 : i64, tpu.core_type = #tpu.core_type<tc>, window_params = [{transform_indices = @transform_0, window_bounds = array<i64: 8, 256>}, {transform_indices = @transform_1, window_bounds = array<i64: 8, 256>}]} {
    %c0 = arith.constant 0 : index
    %0 = memref.load %arg1[%c0] : memref<1xi32, #tpu.memory_space<smem>>
    %c-1640531527_i32 = arith.constant -1640531527 : i32
    %1 = arith.muli %0, %c-1640531527_i32 : i32
    %c-2048144789_i32 = arith.constant -2048144789 : i32
    %2 = arith.muli %arg0, %c-2048144789_i32 : i32
    %3 = arith.addi %1, %2 : i32
    %c1779033703_i32 = arith.constant 1779033703 : i32
    %4 = arith.addi %3, %c1779033703_i32 : i32
    %5 = tpu.iota {dimensions = array<i32: 0>} : vector<8x128xi32>
    %6 = tpu.iota {dimensions = array<i32: 1>} : vector<8x128xi32>
    %c128_i32 = arith.constant 128 : i32
    %7 = vector.broadcast %c128_i32 : i32 to vector<8x128xi32>
    %8 = arith.muli %5, %7 : vector<8x128xi32>
    %9 = arith.addi %8, %6 : vector<8x128xi32>
    %c2_i32 = arith.constant 2 : i32
    %10 = vector.broadcast %c2_i32 : i32 to vector<8x128xi32>
    %11 = arith.muli %9, %10 : vector<8x128xi32>
    %c-862048943_i32 = arith.constant -862048943 : i32
    %12 = vector.broadcast %c-862048943_i32 : i32 to vector<8x128xi32>
    %13 = arith.muli %11, %12 : vector<8x128xi32>
    %c15_i32 = arith.constant 15 : i32
    %14 = vector.broadcast %c15_i32 : i32 to vector<8x128xi32>
    %15 = arith.shrui %13, %14 : vector<8x128xi32>
    %16 = arith.xori %13, %15 : vector<8x128xi32>
    %c461845907_i32 = arith.constant 461845907 : i32
    %17 = vector.broadcast %c461845907_i32 : i32 to vector<8x128xi32>
    %18 = arith.muli %16, %17 : vector<8x128xi32>
    %19 = vector.broadcast %4 : i32 to vector<8x128xi32>
    %20 = arith.xori %18, %19 : vector<8x128xi32>
    %c13_i32 = arith.constant 13 : i32
    %21 = vector.broadcast %c13_i32 : i32 to vector<8x128xi32>
    %22 = arith.shrui %20, %21 : vector<8x128xi32>
    %23 = arith.xori %20, %22 : vector<8x128xi32>
    %c-1028477387_i32 = arith.constant -1028477387 : i32
    %24 = vector.broadcast %c-1028477387_i32 : i32 to vector<8x128xi32>
    %25 = arith.muli %23, %24 : vector<8x128xi32>
    %c16_i32 = arith.constant 16 : i32
    %26 = vector.broadcast %c16_i32 : i32 to vector<8x128xi32>
    %27 = arith.shrui %25, %26 : vector<8x128xi32>
    %28 = arith.xori %25, %27 : vector<8x128xi32>
    %c1_i32 = arith.constant 1 : i32
    %29 = vector.broadcast %c1_i32 : i32 to vector<8x128xi32>
    %30 = arith.addi %11, %29 : vector<8x128xi32>
    %c-862048943_i32_0 = arith.constant -862048943 : i32
    %31 = vector.broadcast %c-862048943_i32_0 : i32 to vector<8x128xi32>
    %32 = arith.muli %30, %31 : vector<8x128xi32>
    %c15_i32_1 = arith.constant 15 : i32
    %33 = vector.broadcast %c15_i32_1 : i32 to vector<8x128xi32>
    %34 = arith.shrui %32, %33 : vector<8x128xi32>
    %35 = arith.xori %32, %34 : vector<8x128xi32>
    %c461845907_i32_2 = arith.constant 461845907 : i32
    %36 = vector.broadcast %c461845907_i32_2 : i32 to vector<8x128xi32>
    %37 = arith.muli %35, %36 : vector<8x128xi32>
    %38 = vector.broadcast %4 : i32 to vector<8x128xi32>
    %39 = arith.xori %37, %38 : vector<8x128xi32>
    %c13_i32_3 = arith.constant 13 : i32
    %40 = vector.broadcast %c13_i32_3 : i32 to vector<8x128xi32>
    %41 = arith.shrui %39, %40 : vector<8x128xi32>
    %42 = arith.xori %39, %41 : vector<8x128xi32>
    %c-1028477387_i32_4 = arith.constant -1028477387 : i32
    %43 = vector.broadcast %c-1028477387_i32_4 : i32 to vector<8x128xi32>
    %44 = arith.muli %42, %43 : vector<8x128xi32>
    %c16_i32_5 = arith.constant 16 : i32
    %45 = vector.broadcast %c16_i32_5 : i32 to vector<8x128xi32>
    %46 = arith.shrui %44, %45 : vector<8x128xi32>
    %47 = arith.xori %44, %46 : vector<8x128xi32>
    %c8_i32 = arith.constant 8 : i32
    %48 = vector.broadcast %c8_i32 : i32 to vector<8x128xi32>
    %49 = arith.shrui %28, %48 : vector<8x128xi32>
    %50 = arith.sitofp %49 : vector<8x128xi32> to vector<8x128xf32>
    %cst = arith.constant 1.000000e+00 : f32
    %51 = vector.broadcast %cst : f32 to vector<8x128xf32>
    %52 = arith.addf %50, %51 : vector<8x128xf32>
    %cst_6 = arith.constant 5.96046448E-8 : f32
    %53 = vector.broadcast %cst_6 : f32 to vector<8x128xf32>
    %54 = arith.mulf %52, %53 : vector<8x128xf32>
    %c8_i32_7 = arith.constant 8 : i32
    %55 = vector.broadcast %c8_i32_7 : i32 to vector<8x128xi32>
    %56 = arith.shrui %47, %55 : vector<8x128xi32>
    %57 = arith.sitofp %56 : vector<8x128xi32> to vector<8x128xf32>
    %cst_8 = arith.constant 5.96046448E-8 : f32
    %58 = vector.broadcast %cst_8 : f32 to vector<8x128xf32>
    %59 = arith.mulf %57, %58 : vector<8x128xf32>
    %60 = math.log %54 : vector<8x128xf32>
    %cst_9 = arith.constant -2.000000e+00 : f32
    %61 = vector.broadcast %cst_9 : f32 to vector<8x128xf32>
    %62 = arith.mulf %61, %60 : vector<8x128xf32>
    %63 = math.sqrt %62 : vector<8x128xf32>
    %cst_10 = arith.constant 6.28318548 : f32
    %64 = vector.broadcast %cst_10 : f32 to vector<8x128xf32>
    %65 = arith.mulf %64, %59 : vector<8x128xf32>
    %66 = math.cos %65 : vector<8x128xf32>
    %67 = arith.mulf %63, %66 : vector<8x128xf32>
    %68 = math.sin %65 : vector<8x128xf32>
    %69 = arith.mulf %63, %68 : vector<8x128xf32>
    %c0_11 = arith.constant 0 : index
    %c0_12 = arith.constant 0 : index
    %70 = vector.load %arg2[%c0_11, %c0_12] : memref<8x256xf32, #tpu.memory_space<vmem>>, vector<8x128xf32>
    %c0_13 = arith.constant 0 : index
    %c128 = arith.constant 128 : index
    %71 = vector.load %arg2[%c0_13, %c128] : memref<8x256xf32, #tpu.memory_space<vmem>>, vector<8x128xf32>
    %cst_14 = arith.constant 0.428571433 : f32
    %72 = vector.broadcast %cst_14 : f32 to vector<8x128xf32>
    %73 = arith.mulf %72, %67 : vector<8x128xf32>
    %cst_15 = arith.constant 1.000000e+00 : f32
    %74 = vector.broadcast %cst_15 : f32 to vector<8x128xf32>
    %75 = arith.addf %74, %73 : vector<8x128xf32>
    %76 = arith.mulf %70, %75 : vector<8x128xf32>
    %c0_16 = arith.constant 0 : index
    %c0_17 = arith.constant 0 : index
    %77 = vector.load %arg3[%c0_16, %c0_17] : memref<8x256xf32, #tpu.memory_space<vmem>>, vector<8x128xf32>
    tpu.vector_store %arg3[%c0_16, %c0_17], %76 {strides = array<i32>} : memref<8x256xf32, #tpu.memory_space<vmem>>, vector<8x128xf32>,
    %cst_18 = arith.constant 0.428571433 : f32
    %78 = vector.broadcast %cst_18 : f32 to vector<8x128xf32>
    %79 = arith.mulf %78, %69 : vector<8x128xf32>
    %cst_19 = arith.constant 1.000000e+00 : f32
    %80 = vector.broadcast %cst_19 : f32 to vector<8x128xf32>
    %81 = arith.addf %80, %79 : vector<8x128xf32>
    %82 = arith.mulf %71, %81 : vector<8x128xf32>
    %c0_20 = arith.constant 0 : index
    %c128_21 = arith.constant 128 : index
    %83 = vector.load %arg3[%c0_20, %c128_21] : memref<8x256xf32, #tpu.memory_space<vmem>>, vector<8x128xf32>
    tpu.vector_store %arg3[%c0_20, %c128_21], %82 {strides = array<i32>} : memref<8x256xf32, #tpu.memory_space<vmem>>, vector<8x128xf32>,
    return
  }
  func.func @transform_0(%arg0: i32, %arg1: memref<1xi32, #tpu.memory_space<smem>>) -> (i32, i32) {
    %c0_i32 = arith.constant 0 : i32
    %c0_i32_0 = arith.constant 0 : i32
    return %arg0, %c0_i32 : i32, i32
  }
  func.func @transform_1(%arg0: i32, %arg1: memref<1xi32, #tpu.memory_space<smem>>) -> (i32, i32) {
    %c0_i32 = arith.constant 0 : i32
    %c0_i32_0 = arith.constant 0 : i32
    return %arg0, %c0_i32 : i32, i32
  }
}

</mosaic_0001>

<llo_original>
// kernel: tpu_custom_call.1
$region0: #{tpu_custom_call.1}
  #allocation0 [shape = 'u32[]', space=smem, size = 0x4, offset = 0x4, fixed_abs, tag = 'smem constant byte address 0x4 - core index']
  #allocation1 [shape = 'u32[144,128]{1,0:T(1,128)}', space=vmem, size = 0x12000, scoped, tag = 'internal scratch']
  #allocation2 [shape = 's32[1]{0}', space=sflag, size = 0x4, scoped, tag = 'scoped memory for tpu_custom_call.1']
  #allocation3 [shape = 's32[1]{0:T(128)S(6)}', space=smem, size = 0x200, scoped, tag = 'prefetched SMEM operand 0']
  %s0 = inlined_call_operand.<no memory space> [shape: s32[1], index: 0, kind: input, shape index: {}]
  %s1 = inlined_call_operand.hbm [shape: f32[8,256], index: 1, kind: input, shape index: {}]
  %s2 = inlined_call_operand.hbm [shape: f32[8,256], index: 2, kind: output, shape index: {}]
  %s3 = sld [smem:[#allocation0]]
  $region18: #{tpu_custom_call.1} parent=0
    _
  %s5 = ssub.s32 1, %s3
  %s6 = scalar_select 0, %s5, %s3
  %7 = sst [smem:[#allocation3]] %s0
  $region1: #{tpu_custom_call.1} parent=0
    #allocation4 [shape = 'u8[8192]{0}', space=vmem, size = 0x2000, scoped, tag = 'input window, operand 1, single buffered']
    #allocation5 [shape = 's32[1]{0}', space=sflag, size = 0x4, scoped, tag = 'scoped memory for tpu_custom_call.1']
    #allocation6 [shape = 's32[1]{0}', space=sflag, size = 0x4, scoped, tag = 'scoped memory for tpu_custom_call.1']
    #allocation7 [shape = 'u8[8192]{0}', space=vmem, size = 0x2000, scoped, tag = 'output window, operand 0, single buffered']
    %8 = vsyncpa [#allocation5], 0
    %9 = vsyncpa [#allocation6], 0
    // Predicated region
    $region2: #{tpu_custom_call.1} parent=1 // pred_check
      _
    $region3: #{tpu_custom_call.1} parent=1 // pred_check_branch
      %11 = sbr.rel (0) target = $region5
    $region4: #{tpu_custom_call.1} parent=1 // pred_region
      %s13 = ssub.s32 256, 256
      %14 = vsyncadd [#allocation5], %s13
      %s16 = sshll.u32 [#allocation4], 4
      %s17 = int_to_ptr.vmem [resolvable:$true] %s16
      %19 = dma.hbm_to_vmem [thread:$0]  %s1, 256, %s17, [#allocation5]
    $region5: #{tpu_custom_call.1} parent=1 // pred_fallthru
      _
    // Predicated region
    $region6: #{tpu_custom_call.1} parent=1 // pred_check
      _
    $region7: #{tpu_custom_call.1} parent=1 // pred_check_branch
      %21 = sbr.rel (0) target = $region9
    $region8: #{tpu_custom_call.1} parent=1 // pred_region
      %22 = dma.done [#allocation5], 256
    $region9: #{tpu_custom_call.1} parent=1 // pred_fallthru
      _
    %s23 = sld [smem:[#allocation3]]
    %s24 = smul.u32 %s23, 2654435769
    %s25 = smul.u32 0, 2246822507
    %s26 = sadd.s32 %s24, %s25
    %s27 = sadd.s32 %s26, 1779033703
    %v28 = vlaneseq
    %v29 = vshrl.u32 %v28, 7
    %v30 = vlaneseq
    %v31 = vand.u32 %v30, 127
    %v32 = vmul.u32 %v29, 128
    %v33 = vadd.s32 %v32, %v31
    %v34 = vmul.u32 %v33, 2
    %v35 = vmul.u32 %v34, 3432918353
    %v36 = vshrl.u32 %v35, 15
    %v37 = vxor.u32 %v35, %v36
    %v38 = vmul.u32 %v37, 461845907
    %v39 = vstv %s27
    %v40 = vxor.u32 %v38, %v39
    %v41 = vshrl.u32 %v40, 13
    %v42 = vxor.u32 %v40, %v41
    %v43 = vmul.u32 %v42, 3266489909
    %v44 = vshrl.u32 %v43, 16
    %v45 = vxor.u32 %v43, %v44
    %v46 = vadd.s32 %v34, 1
    %v47 = vmul.u32 %v46, 3432918353
    %v48 = vshrl.u32 %v47, 15
    %v49 = vxor.u32 %v47, %v48
    %v50 = vmul.u32 %v49, 461845907
    %v51 = vxor.u32 %v50, %v39
    %v52 = vshrl.u32 %v51, 13
    %v53 = vxor.u32 %v51, %v52
    %v54 = vmul.u32 %v53, 3266489909
    %v55 = vshrl.u32 %v54, 16
    %v56 = vxor.u32 %v54, %v55
    %v57 = vshrl.u32 %v45, 8
    %v58 = vcvt.s32.f32 %v57
    %v59 = vadd.f32 %v58, 1.0
    %v60 = vmul.f32 %v59, 5.9604645e-08
    %v61 = vshrl.u32 %v56, 8
    %v62 = vcvt.s32.f32 %v61
    %v63 = vmul.f32 %v62, 5.9604645e-08
    %v64 = vlog2.pop %v60
    %v65 = vmul.f32 %v64, 0.6931472
    %v66 = vmul.f32 %v65, -2.0
    %v67 = vrsqrt.pop %v66
    %v68 = vmul.f32 %v66, %v67
    %vm69 = vcmp.eq.f32.partialorder %v66, inf
    %v70 = vsel %vm69, %v66, %v68
    %vm71 = vcmp.eq.f32.partialorder %v66, 0.0
    %v72 = vand.u32 %v66, 2147483648
    %v73 = vsel %vm71, %v72, %v70
    %v74 = vmul.f32 %v63, 6.2831855
    %v75 = vand.u32 2147483647, %v74
    %vm76 = vcmp.le.f32.partialorder %v75, 0.7853982
    %vm77 = vcmp.lt.s32.totalorder %v74, 0
    %v78 = vand.u32 %v74, 2139095040
    %v79 = vshrl.u32 %v78, 23
    %v80 = vsub.s32 %v79, 127
    %v81 = vand.u32 2147483647, %v74
    %v82 = vand.u32 %v81, 8388607
    %v83 = vor.u32 %v82, 8388608
    %v84 = vsub.s32 0, %v83
    %v85 = vadd.s32 %v80, 1
    %vm86 = vcmp.gt.s32.totalorder %v85, 0
    %v87 = vsel %vm86, %v85, 0
    %v88 = vshrl.u32 %v87, 5
    %v89 = vand.u32 %v87, 31
    %v90 = vsub.s32 32, %v89
    %v91 = vshrl.u32 683565275, %v90
    %v92 = vshll.u32 683565275, %v89
    %v93 = vshrl.u32 2475754826, %v90
    %v94 = vor.u32 %v92, %v93
    %v95 = vshll.u32 2475754826, %v89
    %v96 = vshrl.u32 2131351028, %v90
    %v97 = vor.u32 %v95, %v96
    %v98 = vshll.u32 2131351028, %v89
    %v99 = vshrl.u32 2102212464, %v90
    %v100 = vor.u32 %v98, %v99
    %v101 = vshll.u32 2102212464, %v89
    %v102 = vshrl.u32 920167782, %v90
    %v103 = vor.u32 %v101, %v102
    %v104 = vshll.u32 920167782, %v89
    %v105 = vshrl.u32 1326507024, %v90
    %v106 = vor.u32 %v104, %v105
    %vm107 = vcmp.lt.s32.totalorder %v88, 1
    %vm108 = vcmp.lt.s32.totalorder %v88, 2
    %vm109 = vcmp.lt.s32.totalorder %v88, 3
    %vm110 = vcmp.lt.s32.totalorder %v88, 4
    %v111 = vsel %vm107, %v91, %v94
    %v112 = vsel %vm110, %v100, 2102212464
    %v113 = vsel %vm109, %v97, %v112
    %v114 = vsel %vm108, %v111, %v113
    %v115 = vsel %vm107, %v94, %v97
    %v116 = vsel %vm110, %v103, 920167782
    %v117 = vsel %vm109, %v100, %v116
    %v118 = vsel %vm108, %v115, %v117
    %v119 = vsel %vm107, %v97, %v100
    %v120 = vsel %vm110, %v106, 1326507024
    %v121 = vsel %vm109, %v103, %v120
    %v122 = vsel %vm108, %v119, %v121
    %v123 = vshll.u32 %v83, 8
    %v124 = vmul.u32.u64.compose %v123, %v122
    %v125 = vextract.low.u32 %v124
    %v126 = vextract.high.u32 %v124
    %v127 = vmul.u32.u64.compose %v123, %v118
    %v128 = vextract.low.u32 %v127
    %v129 = vextract.high.u32 %v127
    %v130 = vmul.u32 %v123, %v114
    %v131 = vadd.s32 %v126, %v128
    %vm132 = vc.u32 %v126, %v128
    %v133 = vadd.s32 %v129, 1
    %v134 = vsel %vm132, %v133, %v129
    %v135 = vadd.s32 %v130, %v134
    %v136 = vadd.s32 %v135, 536870912
    %v137 = vshrl.u32 %v136, 30
    %v138 = vshll.u32 %v137, 30
    %v139 = vsub.s32 %v135, %v138
    %vm140 = vcmp.lt.s32.totalorder %v139, 0
    %v141 = vsub.s32 0, %v139
    %v142 = vsel %vm140, %v141, %v139
    %v143 = vclz %v142
    %v144 = vsub.s32 %v143, 2
    %vm145 = vcmp.gt.s32.totalorder 0, %v144
    %v146 = vsel %vm145, 0, %v144
    %v147 = vsub.s32 32, %v146
    %v148 = vshll.u32 %v139, %v146
    %v149 = vshrl.u32 %v131, %v147
    %v150 = vor.u32 %v148, %v149
    %v151 = vsub.s32 4294967266, %v146
    %v152 = vadd.s32 %v151, 127
    %v153 = vshll.u32 %v152, 23
    %v154 = vor.u32 4788187, %v153
    %v155 = vand.u32 2147483647, %v154
    %v157 = vcvt.s32.f32 %v150
    %v158 = vmul.f32 %v157, %v155
    %v159 = vxor.u32 %v158, 2147483648
    %v160 = vsel %vm77, %v159, %v158
    %v161 = vsub.s32 4, %v137
    %v162 = vsel %vm77, %v161, %v137
    %v163 = vsel %vm76, %v74, %v160
    %v164 = vsel %vm76, 0, %v162
    %v165 = vcosq.f32.pop %v163
    %v166 = vsinq.f32.pop %v163
    %vm167 = vweird.f32 %v74
    %v168 = vand.u32 %v164, 3
    %vm169 = vcmp.lt.s32.totalorder %v168, 2
    %vm170 = vcmp.eq.s32.totalorder %v168, 0
    %v171 = vxor.u32 %v166, 2147483648
    %v172 = vsel %vm170, %v165, %v171
    %vm173 = vcmp.eq.s32.totalorder %v168, 2
    %v174 = vxor.u32 %v165, 2147483648
    %v175 = vsel %vm173, %v174, %v166
    %v176 = vsel %vm169, %v172, %v175
    %v177 = vsel %vm167, nan, %v176
    %v178 = vmul.f32 %v73, %v177
    %v179 = vand.u32 2147483647, %v74
    %vm180 = vcmp.le.f32.partialorder %v179, 0.7853982
    %vm181 = vcmp.lt.s32.totalorder %v74, 0
    %v182 = vand.u32 %v74, 2139095040
    %v183 = vshrl.u32 %v182, 23
    %v184 = vsub.s32 %v183, 127
    %v185 = vand.u32 2147483647, %v74
    %v186 = vand.u32 %v185, 8388607
    %v187 = vor.u32 %v186, 8388608
    %v188 = vsub.s32 0, %v187
    %v189 = vadd.s32 %v184, 1
    %vm190 = vcmp.gt.s32.totalorder %v189, 0
    %v191 = vsel %vm190, %v189, 0
    %v192 = vshrl.u32 %v191, 5
    %v193 = vand.u32 %v191, 31
    %v194 = vsub.s32 32, %v193
    %v195 = vshrl.u32 683565275, %v194
    %v196 = vshll.u32 683565275, %v193
    %v197 = vshrl.u32 2475754826, %v194
    %v198 = vor.u32 %v196, %v197
    %v199 = vshll.u32 2475754826, %v193
    %v200 = vshrl.u32 2131351028, %v194
    %v201 = vor.u32 %v199, %v200
    %v202 = vshll.u32 2131351028, %v193
    %v203 = vshrl.u32 2102212464, %v194
    %v204 = vor.u32 %v202, %v203
    %v205 = vshll.u32 2102212464, %v193
    %v206 = vshrl.u32 920167782, %v194
    %v207 = vor.u32 %v205, %v206
    %v208 = vshll.u32 920167782, %v193
    %v209 = vshrl.u32 1326507024, %v194
    %v210 = vor.u32 %v208, %v209
    %vm211 = vcmp.lt.s32.totalorder %v192, 1
    %vm212 = vcmp.lt.s32.totalorder %v192, 2
    %vm213 = vcmp.lt.s32.totalorder %v192, 3
    %vm214 = vcmp.lt.s32.totalorder %v192, 4
    %v215 = vsel %vm211, %v195, %v198
    %v216 = vsel %vm214, %v204, 2102212464
    %v217 = vsel %vm213, %v201, %v216
    %v218 = vsel %vm212, %v215, %v217
    %v219 = vsel %vm211, %v198, %v201
    %v220 = vsel %vm214, %v207, 920167782
    %v221 = vsel %vm213, %v204, %v220
    %v222 = vsel %vm212, %v219, %v221
    %v223 = vsel %vm211, %v201, %v204
    %v224 = vsel %vm214, %v210, 1326507024
    %v225 = vsel %vm213, %v207, %v224
    %v226 = vsel %vm212, %v223, %v225
    %v227 = vshll.u32 %v187, 8
    %v228 = vmul.u32.u64.compose %v227, %v226
    %v229 = vextract.low.u32 %v228
    %v230 = vextract.high.u32 %v228
    %v231 = vmul.u32.u64.compose %v227, %v222
    %v232 = vextract.low.u32 %v231
    %v233 = vextract.high.u32 %v231
    %v234 = vmul.u32 %v227, %v218
    %v235 = vadd.s32 %v230, %v232
    %vm236 = vc.u32 %v230, %v232
    %v237 = vadd.s32 %v233, 1
    %v238 = vsel %vm236, %v237, %v233
    %v239 = vadd.s32 %v234, %v238
    %v240 = vadd.s32 %v239, 536870912
    %v241 = vshrl.u32 %v240, 30
    %v242 = vshll.u32 %v241, 30
    %v243 = vsub.s32 %v239, %v242
    %vm244 = vcmp.lt.s32.totalorder %v243, 0
    %v245 = vsub.s32 0, %v243
    %v246 = vsel %vm244, %v245, %v243
    %v247 = vclz %v246
    %v248 = vsub.s32 %v247, 2
    %vm249 = vcmp.gt.s32.totalorder 0, %v248
    %v250 = vsel %vm249, 0, %v248
    %v251 = vsub.s32 32, %v250
    %v252 = vshll.u32 %v243, %v250
    %v253 = vshrl.u32 %v235, %v251
    %v254 = vor.u32 %v252, %v253
    %v255 = vsub.s32 4294967266, %v250
    %v256 = vadd.s32 %v255, 127
    %v257 = vshll.u32 %v256, 23
    %v258 = vor.u32 4788187, %v257
    %v259 = vand.u32 2147483647, %v258
    %v261 = vcvt.s32.f32 %v254
    %v262 = vmul.f32 %v261, %v259
    %v263 = vxor.u32 %v262, 2147483648
    %v264 = vsel %vm181, %v263, %v262
    %v265 = vsub.s32 4, %v241
    %v266 = vsel %vm181, %v265, %v241
    %v267 = vsel %vm180, %v74, %v264
    %v268 = vsel %vm180, 0, %v266
    %v269 = vcosq.f32.pop %v267
    %v270 = vsinq.f32.pop %v267
    %vm271 = vweird.f32 %v74
    %v272 = vadd.s32 %v268, 3
    %v273 = vand.u32 %v272, 3
    %vm274 = vcmp.lt.s32.totalorder %v273, 2
    %vm275 = vcmp.eq.s32.totalorder %v273, 0
    %v276 = vxor.u32 %v270, 2147483648
    %v277 = vsel %vm275, %v269, %v276
    %vm278 = vcmp.eq.s32.totalorder %v273, 2
    %v279 = vxor.u32 %v269, 2147483648
    %v280 = vsel %vm278, %v279, %v270
    %v281 = vsel %vm274, %v277, %v280
    %v282 = vsel %vm271, nan, %v281
    %v283 = vmul.f32 %v73, %v282
    %v284 = vld [vmem:[#allocation4] sm:$0xff]
    %v285 = vld [vmem:[#allocation4 + $0x8] sm:$0xff]
    %v286 = vmul.f32 %v178, 0.42857143
    %v287 = vadd.f32 %v286, 1.0
    %v288 = vmul.f32 %v284, %v287
    %289 = vst [vmem:[#allocation7] sm:$0xff] %v288
    %v290 = vmul.f32 %v283, 0.42857143
    %v291 = vadd.f32 %v290, 1.0
    %v292 = vmul.f32 %v285, %v291
    %293 = vst [vmem:[#allocation7 + $0x8] sm:$0xff] %v292
    // Predicated region
    $region10: #{tpu_custom_call.1} parent=1 // pred_check
      _
    $region11: #{tpu_custom_call.1} parent=1 // pred_check_branch
      %295 = sbr.rel (0) target = $region13
    $region12: #{tpu_custom_call.1} parent=1 // pred_region
      %s297 = ssub.s32 256, 256
      %298 = vsyncadd [#allocation6], %s297
      %s300 = sshll.u32 [#allocation7], 4
      %s301 = int_to_ptr.vmem [resolvable:$true] %s300
      %303 = dma.vmem_to_hbm [thread:$0]  %s301, 256, %s2, [#allocation6]
    $region13: #{tpu_custom_call.1} parent=1 // pred_fallthru
      _
    // Predicated region
    $region14: #{tpu_custom_call.1} parent=1 // pred_check
      _
    $region15: #{tpu_custom_call.1} parent=1 // pred_check_branch
      %305 = sbr.rel (0) target = $region17
    $region16: #{tpu_custom_call.1} parent=1 // pred_region
      %306 = dma.done [#allocation6], 256
    $region17: #{tpu_custom_call.1} parent=1 // pred_fallthru
      _
    %307 = vsyncpa [#allocation5], 1
    %308 = vsyncpa [#allocation6], 1

</llo_original>
